<compile_context>
chip_gen: v7x
topology: tpu7x:2x2x1
jax: 0.10.0
libtpu: 0.0.40
codegen_flags: <defaults>
</compile_context>

<pallas_src>
import functools

import jax
import jax.numpy as jnp
from jax.experimental import pallas as pl
from jax.experimental.pallas import tpu as pltpu

_LANE = 128


def _dsmp_kernel(x_ref, o_ref, *, eps, num_ch):
    # x_ref: (1, C, S_TILE, 128)   o_ref: (1, C-1, S_TILE, 128)
    x = x_ref[...]
    m = x[:, num_ch - 1:, :, :]                              # (1, 1, S, 128)
    denom = 1.0 - m + eps * (num_ch - 1)
    s = m * pl.reciprocal(denom, approx=False)               # 1 recip per spatial elem
    x_front = x[:, : num_ch - 1, :, :]                       # (1, C-1, S, 128) static slice
    # Compute only the C-1 kept channels, write directly (no post-compute slice).
    o_ref[...] = x_front + (x_front + eps) * s


def _pick_spatial_tile(num_ch, rows_total):
    """Rows of 128 lanes per grid step, bounded by a double-buffered VMEM budget."""
    # Bytes per row-of-128 for (input C channels + output C-1 channels), f32,
    # double-buffered. Keep the working set under ~8 MiB (fits v5e's 16 MiB
    # default scoped VMEM and v7x's 64 MiB physical with plenty of headroom).
    bytes_per_row = (2 * num_ch - 1) * _LANE * 4 * 2
    max_rows = max(8, (8 * 1024 * 1024) // bytes_per_row)
    max_rows = max(8, (max_rows // 8) * 8)
    max_rows = min(max_rows, 1024)
    if rows_total <= max_rows:
        return rows_total, 1
    s_tile = max_rows
    return s_tile, pl.cdiv(rows_total, s_tile)


def dsmp(x_nchw, eps):
    """x_nchw: (B, C, H, W) float32 -> (B, C-1, H, W) float32."""
    B, C, H, W = x_nchw.shape
    HW = H * W

    rows_total = pl.cdiv(HW, _LANE)
    s_tile, n_tiles = _pick_spatial_tile(C, rows_total)
    padded_rows = s_tile * n_tiles
    padded_hw = padded_rows * _LANE

    x_flat = x_nchw.reshape(B, C, HW)
    if padded_hw != HW:
        # Zero padding is safe: m=0 -> denom = 1 + eps*(C-1) > 0, no NaNs.
        x_flat = jnp.pad(x_flat, ((0, 0), (0, 0), (0, padded_hw - HW)))
    x4 = x_flat.reshape(B, C, padded_rows, _LANE)

    kernel = functools.partial(_dsmp_kernel, eps=float(eps), num_ch=C)

    out4 = pl.pallas_call(
        kernel,
        out_shape=jax.ShapeDtypeStruct((B, C - 1, padded_rows, _LANE), x4.dtype),
        grid_spec=pltpu.PrefetchScalarGridSpec(
            num_scalar_prefetch=0,
            grid=(B, n_tiles),
            in_specs=[pl.BlockSpec((1, C, s_tile, _LANE),
                                   lambda b, t: (b, 0, t, 0))],
            out_specs=pl.BlockSpec((1, C - 1, s_tile, _LANE),
                                   lambda b, t: (b, 0, t, 0)),
        ),
        compiler_params=pltpu.CompilerParams(
            dimension_semantics=("parallel", "parallel")),
    )(x4)

    out_flat = out4.reshape(B, C - 1, padded_hw)
    if padded_hw != HW:
        out_flat = out_flat[:, :, :HW]
    return out_flat.reshape(B, C - 1, H, W)


def dsmp_ref(x, eps):
    # Pure-JAX reference mirroring the PyTorch expression exactly.
    m = x[:, None, -1, ...]                              # (B, 1, H, W)
    C = x.shape[1]
    return (x + (x * m + eps * m) / (1 - m + eps * (C - 1)))[:, :-1]


if __name__ == "__main__":
    eps = 1e-3
    B, C, H, W = 2, 4, 16, 16
    key = jax.random.PRNGKey(0)
    # Positive "mass"-like inputs in (0, 1), consistent with a DS belief transform.
    x = jax.random.uniform(key, (B, C, H, W), dtype=jnp.float32, minval=0.0, maxval=0.9)

    out = dsmp(x, eps)
    out = jax.block_until_ready(out)

    ref = dsmp_ref(x, eps)
    assert out.shape == (B, C - 1, H, W)
    assert jnp.allclose(out, ref, rtol=1e-5, atol=1e-5)

    print("KERNEL_OK")
</pallas_src>

<mosaic_0001>
module attributes {stable_mosaic.version = 11 : i64} {
  func.func @_dsmp_kernel(%arg0: i32, %arg1: i32, %arg2: memref<1x4x2x128xf32, #tpu.memory_space<vmem>>, %arg3: memref<1x3x2x128xf32, #tpu.memory_space<vmem>>) attributes {dimension_semantics = [#tpu.dimension_semantics<parallel>, #tpu.dimension_semantics<parallel>], iteration_bounds = array<i64: 2, 1>, scalar_prefetch = 0 : i64, scratch_operands = 0 : i64, tpu.core_type = #tpu.core_type<tc>, window_params = [{transform_indices = @transform_0, window_bounds = array<i64: 1, 4, 2, 128>}, {transform_indices = @transform_1, window_bounds = array<i64: 1, 3, 2, 128>}]} {
    %c0 = arith.constant 0 : index
    %c0_0 = arith.constant 0 : index
    %c0_1 = arith.constant 0 : index
    %c0_2 = arith.constant 0 : index
    %0 = vector.load %arg2[%c0, %c0_0, %c0_1, %c0_2] : memref<1x4x2x128xf32, #tpu.memory_space<vmem>>, vector<1x4x2x128xf32>
    %1 = vector.extract_strided_slice %0 {offsets = [0, 3, 0, 0], sizes = [1, 1, 2, 128], strides = [1, 1, 1, 1]} : vector<1x4x2x128xf32> to vector<1x1x2x128xf32>
    %cst = arith.constant 1.000000e+00 : f32
    %2 = vector.broadcast %cst : f32 to vector<1x1x2x128xf32>
    %3 = arith.subf %2, %1 : vector<1x1x2x128xf32>
    %cst_3 = arith.constant 3.000000e-03 : f32
    %4 = vector.broadcast %cst_3 : f32 to vector<1x1x2x128xf32>
    %5 = arith.addf %3, %4 : vector<1x1x2x128xf32>
    %6 = tpu.reciprocal %5 : vector<1x1x2x128xf32> -> vector<1x1x2x128xf32>
    %7 = arith.mulf %1, %6 : vector<1x1x2x128xf32>
    %8 = vector.extract_strided_slice %0 {offsets = [0, 0, 0, 0], sizes = [1, 3, 2, 128], strides = [1, 1, 1, 1]} : vector<1x4x2x128xf32> to vector<1x3x2x128xf32>
    %cst_4 = arith.constant 1.000000e-03 : f32
    %9 = vector.broadcast %cst_4 : f32 to vector<1x3x2x128xf32>
    %10 = arith.addf %8, %9 : vector<1x3x2x128xf32>
    %11 = vector.broadcast %7 : vector<1x1x2x128xf32> to vector<1x3x2x128xf32>
    %12 = arith.mulf %10, %11 : vector<1x3x2x128xf32>
    %13 = arith.addf %8, %12 : vector<1x3x2x128xf32>
    %c0_5 = arith.constant 0 : index
    %c0_6 = arith.constant 0 : index
    %c0_7 = arith.constant 0 : index
    %c0_8 = arith.constant 0 : index
    %14 = vector.load %arg3[%c0_5, %c0_6, %c0_7, %c0_8] : memref<1x3x2x128xf32, #tpu.memory_space<vmem>>, vector<1x3x2x128xf32>
    tpu.vector_store %arg3[%c0_5, %c0_6, %c0_7, %c0_8], %13 {strides = array<i32>} : memref<1x3x2x128xf32, #tpu.memory_space<vmem>>, vector<1x3x2x128xf32>,
    return
  }
  func.func @transform_0(%arg0: i32, %arg1: i32) -> (i32, i32, i32, i32) {
    %c0_i32 = arith.constant 0 : i32
    %c0_i32_0 = arith.constant 0 : i32
    %c0_i32_1 = arith.constant 0 : i32
    return %arg0, %c0_i32, %arg1, %c0_i32_0 : i32, i32, i32, i32
  }
  func.func @transform_1(%arg0: i32, %arg1: i32) -> (i32, i32, i32, i32) {
    %c0_i32 = arith.constant 0 : i32
    %c0_i32_0 = arith.constant 0 : i32
    %c0_i32_1 = arith.constant 0 : i32
    return %arg0, %c0_i32, %arg1, %c0_i32_0 : i32, i32, i32, i32
  }
}

</mosaic_0001>

<llo_original>
// kernel: tpu_custom_call.1
$region0: #{tpu_custom_call.1}
  #allocation0 [shape = 'u32[]', space=smem, size = 0x4, offset = 0x4, fixed_abs, tag = 'smem constant byte address 0x4 - core index']
  #allocation1 [shape = 'u32[144,128]{1,0:T(1,128)}', space=vmem, size = 0x12000, scoped, tag = 'internal scratch']
  %s0 = inlined_call_operand.hbm [shape: f32[2,4,2,128], index: 0, kind: input, shape index: {}]
  %s1 = inlined_call_operand.hbm [shape: f32[2,3,2,128], index: 1, kind: output, shape index: {}]
  %s2 = sld [smem:[#allocation0]]
  $region41: #{tpu_custom_call.1} parent=0
    _
  %s4 = ssub.s32 1, %s2
  %s5 = scalar_select 0, %s4, %s2
  $region1: #{tpu_custom_call.1} parent=0
    #allocation2 [shape = 'u8[8192]{0}', space=vmem, size = 0x2000, scoped, tag = 'input window, operand 0']
    #allocation3 [shape = 's32[2]{0}', space=sflag, size = 0x8, scoped, tag = 'scoped memory for tpu_custom_call.1']
    #allocation4 [shape = 's32[2]{0}', space=sflag, size = 0x8, scoped, tag = 'scoped memory for tpu_custom_call.1']
    #allocation5 [shape = 'u8[6144]{0}', space=vmem, size = 0x1800, scoped, tag = 'output window, operand 0']
    %6 = vsyncpa [#allocation3], 0
    %s7 = scalar_lea.sflag [#allocation3], 1
    %8 = vsyncpa %s7, 0
    %9 = vsyncpa [#allocation4], 0
    %s10 = scalar_lea.sflag [#allocation4], 1
    %11 = vsyncpa %s10, 0
    loop: start=0, step=1, limit=4
    $region2: #{tpu_custom_call.1} parent=1 // loop_pre_header
      _
    $region3: #{tpu_custom_call.1} parent=1 // loop_header
      %s13 = sphi 0, %s17
      %p14 = scmp.ge.s32.totalorder %s13, 4
      %s20 = sphi 0, %s32
      %s21 = sphi 0, %s28
      %s22 = sphi 0, %s20
      %s23 = sphi 0, %s21
      %s24 = sphi 0, %s22
      %s25 = sphi 0, %s23
      %s37 = sphi 0, %s39
      %s40 = sphi 0, %s37
      %s41 = sphi 0, %s40
      %s57 = sphi 0, %s41
      %s65 = sphi 0, %s67
      %s68 = sphi 0, %s65
      %s69 = sphi 0, %s68
      %s85 = sphi 0, %s69
    $region4: #{tpu_custom_call.1} parent=1 // loop_header_branch
      %16 = sbr.rel (%p14) target = $region8
    $region5: #{tpu_custom_call.1} parent=1 // loop_body
      %s18 = ssub.s32 %s13, 1
      %s19 = ssub.s32 %s13, 2
      %s26 = sadd.s32 1, %s21
      %p27 = scmp.ge.s32.totalorder %s26, 1
      %s28 = scalar_select %p27, 0, %s26
      %s29 = sadd.s32 1, %s20
      %s30 = scalar_select %p27, %s29, %s20
      %p31 = scmp.ge.s32.totalorder %s30, 2
      %s32 = scalar_select %p31, 0, %s30
      %s33 = ssub.s32 %s20, %s32
      %s34 = ssub.s32 %s21, %s28
      %s35 = sor.u32 %s33, %s34
      %p36 = scmp.eq.s32.totalorder %s35, 0
      %s38 = sadd.s32 %s37, 1
      %s39 = scalar_select %p36, %s37, %s38
      %p42 = pneg %p36
      %p43 = scmp.eq.s32.totalorder %s13, 1
      %p44 = por %p42, %p43
      %p45 = scmp.ne.s32.totalorder %s37, %s40
      %p46 = scmp.eq.s32.totalorder %s13, 0
      %p47 = por %p45, %p46
      %p48 = scmp.ne.s32.totalorder %s37, %s40
      %p49 = scmp.eq.s32.totalorder %s18, 1
      %p50 = por %p48, %p49
      %p51 = scmp.ne.s32.totalorder %s40, %s41
      %p52 = scmp.eq.s32.totalorder %s18, 0
      %p53 = por %p51, %p52
      %p54 = scmp.ne.s32.totalorder %s40, %s41
      %p55 = scmp.eq.s32.totalorder %s19, 1
      %p56 = por %p54, %p55
      %p58 = scmp.ne.s32.totalorder %s41, %s57
      %p59 = scmp.eq.s32.totalorder %s19, 0
      %p60 = por %p58, %p59
      %s61 = ssub.s32 %s20, %s32
      %s62 = ssub.s32 %s21, %s28
      %s63 = sor.u32 %s61, %s62
      %p64 = scmp.eq.s32.totalorder %s63, 0
      %s66 = sadd.s32 %s65, 1
      %s67 = scalar_select %p64, %s65, %s66
      %p70 = pneg %p64
      %p71 = scmp.eq.s32.totalorder %s13, 1
      %p72 = por %p70, %p71
      %p73 = scmp.ne.s32.totalorder %s65, %s68
      %p74 = scmp.eq.s32.totalorder %s13, 0
      %p75 = por %p73, %p74
      %p76 = scmp.ne.s32.totalorder %s65, %s68
      %p77 = scmp.eq.s32.totalorder %s18, 1
      %p78 = por %p76, %p77
      %p79 = scmp.ne.s32.totalorder %s68, %s69
      %p80 = scmp.eq.s32.totalorder %s18, 0
      %p81 = por %p79, %p80
      %p82 = scmp.ne.s32.totalorder %s68, %s69
      %p83 = scmp.eq.s32.totalorder %s19, 1
      %p84 = por %p82, %p83
      %p86 = scmp.ne.s32.totalorder %s69, %s85
      %p87 = scmp.eq.s32.totalorder %s19, 0
      %p88 = por %p86, %p87
      %p89 = scmp.le.s32.totalorder 1, %s13
      %p90 = scmp.lt.s32.totalorder %s13, 3
      %p91 = pnand %p89, %p90
      %p92 = pneg %p91
      // Predicated region
      $region9: #{tpu_custom_call.1} parent=5 // pred_check
        _
      $region10: #{tpu_custom_call.1} parent=5 // pred_check_branch
        %94 = sbr.rel (%p91) target = $region12
      $region11: #{tpu_custom_call.1} parent=5 // pred_region
        %s95 = ssub.s32 %s13, 1
      $region12: #{tpu_custom_call.1} parent=5 // pred_fallthru
        _
      %p96 = scmp.lt.s32.totalorder %s13, 2
      // Predicated region
      $region13: #{tpu_custom_call.1} parent=5 // pred_check
        %p97 = pneg %p96
      $region14: #{tpu_custom_call.1} parent=5 // pred_check_branch
        %99 = sbr.rel (%p97) target = $region16
      $region15: #{tpu_custom_call.1} parent=5 // pred_region
        // Predicated region
        $region17: #{tpu_custom_call.1} parent=15 // pred_check
          %p100 = pneg %p47
        $region18: #{tpu_custom_call.1} parent=15 // pred_check_branch
          %102 = sbr.rel (%p100) target = $region20
        $region19: #{tpu_custom_call.1} parent=15 // pred_region
          %s103 = sand.u32 %s37, 1
          %s104 = scalar_lea.sflag [#allocation3], %s103
          %s105 = sand.u32 %s37, 1
          %s106 = smul.addr %s105, 8
          %s107 = scalar_lea.vmem [#allocation2], %s106
          %s109 = ssub.s32 128, 128
          %110 = vsyncadd %s104, %s109
          %s111 = smul.addr %s20, 4
          %s112 = sadd.s32 %s21, %s111
          %s113 = smul.addr %s112, 32
          %s114 = scalar_lea.hbm %s0, %s113
          %s115 = sshll.u32 %s107, 4
          %s116 = int_to_ptr.vmem [resolvable:$true] %s115
          %121 = dma.hbm_to_vmem [thread:$0]  %s114, 128, %s116, %s104, 32, 32, 2
        $region20: #{tpu_custom_call.1} parent=15 // pred_fallthru
          _
      $region16: #{tpu_custom_call.1} parent=5 // pred_fallthru
        _
      %p122 = scmp.le.s32.totalorder 1, %s13
      %p123 = scmp.lt.s32.totalorder %s13, 3
      %p124 = pnand %p122, %p123
      %p125 = pneg %p124
      // Predicated region
      $region21: #{tpu_custom_call.1} parent=5 // pred_check
        _
      $region22: #{tpu_custom_call.1} parent=5 // pred_check_branch
        %127 = sbr.rel (%p124) target = $region24
      $region23: #{tpu_custom_call.1} parent=5 // pred_region
        %s128 = ssub.s32 %s13, 1
        %s129 = sand.u32 %s40, 1
        %s130 = scalar_lea.sflag [#allocation3], %s129
        %s131 = sand.u32 %s40, 1
        %s132 = smul.addr %s131, 8
        %s133 = scalar_lea.vmem [#allocation2], %s132
        // Predicated region
        $region25: #{tpu_custom_call.1} parent=23 // pred_check
          %p134 = pneg %p53
        $region26: #{tpu_custom_call.1} parent=23 // pred_check_branch
          %136 = sbr.rel (%p134) target = $region28
        $region27: #{tpu_custom_call.1} parent=23 // pred_region
          %137 = dma.done %s130, 128
        $region28: #{tpu_custom_call.1} parent=23 // pred_fallthru
          _
        %s138 = sand.u32 %s40, 1
        %s139 = scalar_lea.sflag [#allocation3], %s138
        %s140 = sand.u32 %s40, 1
        %s141 = smul.addr %s140, 8
        %s142 = scalar_lea.vmem [#allocation2], %s141
        %p143 = pneg %p53
        %p144 = pneg %p50
        %p145 = pneg %p81
        %p146 = pneg %p78
        %s147 = sand.u32 %s68, 1
        %s148 = scalar_lea.sflag [#allocation4], %s147
        %s149 = sand.u32 %s68, 1
        %s150 = smul.addr %s149, 6
        %s151 = scalar_lea.vmem [#allocation5], %s150
        %v152 = vld [vmem:[%s133] sm:$0x3]
        %v153 = vld [vmem:[%s133 + $0x2] sm:$0x3]
        %v154 = vld [vmem:[%s133 + $0x4] sm:$0x3]
        %v155 = vld [vmem:[%s133 + $0x6] sm:$0x3]
        %v156 = vsub.f32 1.0, %v155
        %v157 = vadd.f32 %v156, 0.003
        %v158 = vrcp.pop %v157
        %v159 = vmul.f32 %v155, %v158
        %v160 = vadd.f32 %v152, 0.001
        %v161 = vadd.f32 %v153, 0.001
        %v162 = vadd.f32 %v154, 0.001
        %v163 = vmul.f32 %v160, %v159
        %v164 = vmul.f32 %v161, %v159
        %v165 = vmul.f32 %v162, %v159
        %v166 = vadd.f32 %v152, %v163
        %v167 = vadd.f32 %v153, %v164
        %v168 = vadd.f32 %v154, %v165
        %169 = vst [vmem:[%s151] sm:$0x3] %v166
        %170 = vst [vmem:[%s151 + $0x2] sm:$0x3] %v167
        %171 = vst [vmem:[%s151 + $0x4] sm:$0x3] %v168
        %s172 = sand.u32 %s68, 1
        %s173 = scalar_lea.sflag [#allocation4], %s172
        %s174 = sand.u32 %s68, 1
        %s175 = smul.addr %s174, 6
        %s176 = scalar_lea.vmem [#allocation5], %s175
        // Predicated region
        $region29: #{tpu_custom_call.1} parent=23 // pred_check
          %p177 = pneg %p78
        $region30: #{tpu_custom_call.1} parent=23 // pred_check_branch
          %179 = sbr.rel (%p177) target = $region32
        $region31: #{tpu_custom_call.1} parent=23 // pred_region
          %s181 = ssub.s32 96, 96
          %182 = vsyncadd %s173, %s181
          %s183 = smul.addr %s22, 3
          %s184 = sadd.s32 %s23, %s183
          %s185 = smul.addr %s184, 32
          %s186 = scalar_lea.hbm %s1, %s185
          %s187 = sshll.u32 %s176, 4
          %s188 = int_to_ptr.vmem [resolvable:$true] %s187
          %193 = dma.vmem_to_hbm [thread:$0]  %s188, 96, %s186, %s173, 32, 32, 2
        $region32: #{tpu_custom_call.1} parent=23 // pred_fallthru
          _
      $region24: #{tpu_custom_call.1} parent=5 // pred_fallthru
        _
      %p194 = scmp.le.s32.totalorder 2, %s13
      // Predicated region
      $region33: #{tpu_custom_call.1} parent=5 // pred_check
        %p195 = pneg %p194
      $region34: #{tpu_custom_call.1} parent=5 // pred_check_branch
        %197 = sbr.rel (%p195) target = $region36
      $region35: #{tpu_custom_call.1} parent=5 // pred_region
        %s198 = ssub.s32 %s13, 2
        // Predicated region
        $region37: #{tpu_custom_call.1} parent=35 // pred_check
          %p199 = pneg %p84
        $region38: #{tpu_custom_call.1} parent=35 // pred_check_branch
          %201 = sbr.rel (%p199) target = $region40
        $region39: #{tpu_custom_call.1} parent=35 // pred_region
          %s202 = sand.u32 %s69, 1
          %s203 = scalar_lea.sflag [#allocation4], %s202
          %s204 = sand.u32 %s69, 1
          %s205 = smul.addr %s204, 6
          %s206 = scalar_lea.vmem [#allocation5], %s205
          %207 = dma.done %s203, 96
        $region40: #{tpu_custom_call.1} parent=35 // pred_fallthru
          _
      $region36: #{tpu_custom_call.1} parent=5 // pred_fallthru
        _
    $region6: #{tpu_custom_call.1} parent=1 // loop_footer
      %s17 = sadd.s32 1, %s13
    $region7: #{tpu_custom_call.1} parent=1 // loop_footer_branch
      %12 = sbr.rel target = $region3
    $region8: #{tpu_custom_call.1} parent=1 // loop_exit
      _
    %208 = vsyncpa [#allocation3], 1
    %s209 = scalar_lea.sflag [#allocation3], 1
    %210 = vsyncpa %s209, 1
    %211 = vsyncpa [#allocation4], 1
    %s212 = scalar_lea.sflag [#allocation4], 1
    %213 = vsyncpa %s212, 1

</llo_original>
